<compile_context>
chip_gen: v7x
topology: tpu7x:2x2x1
jax: 0.10.0
libtpu: 0.0.40
codegen_flags: <defaults>
</compile_context>

<pallas_src>
import jax
import jax.numpy as jnp
from jax.experimental import pallas as pl
from jax.experimental.pallas import tpu as pltpu

NUM_REPEATS = 5  # 1 initial mm + 4 loop iterations


def _mm_cat_kernel(x1_ref, x2_ref, o_ref, acc_ref):
    # grid = (m_tiles, k_tiles); k (reduction) is the innermost axis.
    k = pl.program_id(1)
    n = o_ref.shape[1] // NUM_REPEATS  # static

    @pl.when(k == 0)
    def _init():
        acc_ref[...] = jnp.zeros_like(acc_ref)

    acc_ref[...] += jnp.dot(
        x1_ref[...], x2_ref[...], preferred_element_type=jnp.float32
    )

    @pl.when(k == pl.num_programs(1) - 1)
    def _finalize():
        # Cast once at (tm, N), then replicate with static slice stores
        # (no (tm, 5N) f32 value ever lives in vregs).
        res = acc_ref[...].astype(o_ref.dtype)
        for r in range(NUM_REPEATS):
            o_ref[:, r * n:(r + 1) * n] = res


def _pick_tile(dim, pref):
    # Largest convenient tile: preferred size if it divides the dim, otherwise
    # fall back to the full dimension (always legal w.r.t. the (8,128) rule).
    return pref if dim % pref == 0 else dim


def mm_cat(x1, x2):
    M, K = x1.shape
    K2, N = x2.shape
    assert K == K2, "inner dimensions must match for mm"
    out_dtype = jnp.result_type(x1.dtype, x2.dtype)

    tm = _pick_tile(M, 128)
    tk = _pick_tile(K, 256)
    grid = (M // tm, K // tk)

    in_isize = jnp.dtype(x1.dtype).itemsize
    out_isize = jnp.dtype(out_dtype).itemsize

    # Double-buffered inputs/outputs + f32 scratch, with generous headroom.
    # Keep the limit comfortably inside v7x's 64 MiB physical VMEM.
    tile_bytes = 2 * (tm * tk * in_isize
                      + tk * N * in_isize
                      + tm * NUM_REPEATS * N * out_isize) + tm * N * 4
    vmem_limit = min(max(4 * tile_bytes, 16 * 1024 * 1024), 48 * 1024 * 1024)

    # TODO(synk): for very large N, also tile the N axis (output block (tm, tn)
    # indexed by (i, r * n_tiles + j)) so a single output block never exceeds
    # VMEM; unnecessary for these shapes.
    return pl.pallas_call(
        _mm_cat_kernel,
        out_shape=jax.ShapeDtypeStruct((M, NUM_REPEATS * N), out_dtype),
        grid_spec=pltpu.PrefetchScalarGridSpec(
            num_scalar_prefetch=0,
            grid=grid,
            in_specs=[
                pl.BlockSpec((tm, tk), lambda i, k: (i, k)),   # x1 tile
                pl.BlockSpec((tk, N), lambda i, k: (k, 0)),    # x2 K-slab
            ],
            # Output block resident across the K axis (written only at k==last).
            out_specs=pl.BlockSpec((tm, NUM_REPEATS * N), lambda i, k: (i, 0)),
            scratch_shapes=[pltpu.VMEM((tm, N), jnp.float32)],
        ),
        compiler_params=pltpu.CompilerParams(
            # M tiles are independent -> "parallel" (shards across v7x's 2 TCs);
            # K is the reduction -> "arbitrary".
            dimension_semantics=("parallel", "arbitrary"),
            vmem_limit_bytes=vmem_limit,
        ),
        # Accurate cost: ONE matmul + 5x writeback, not five matmuls.
        cost_estimate=pl.CostEstimate(
            flops=2 * M * K * N,
            bytes_accessed=(in_isize * (M * K + K * N)
                            + out_isize * NUM_REPEATS * M * N),
            transcendentals=0,
        ),
    )(x1, x2)


if __name__ == "__main__":
    # Small shapes consistent with the module's forward (x1 @ x2 must be valid):
    # x1: (M, K), x2: (K, N).  Chosen so the (M, K) tiling and the lane-dense
    # (5N multiple of 128) output path are actually exercised: grid = (2, 2).
    M, K, N = 256, 512, 128
    key = jax.random.PRNGKey(0)
    k1, k2 = jax.random.split(key)
    x1 = jax.random.normal(k1, (M, K), dtype=jnp.float32)
    x2 = jax.random.normal(k2, (K, N), dtype=jnp.float32)

    out = mm_cat(x1, x2)
    out = jax.block_until_ready(out)

    # Reference check in plain JAX.
    mm = x1 @ x2
    ref = jnp.concatenate([mm] * NUM_REPEATS, axis=1)
    assert out.shape == (M, NUM_REPEATS * N), out.shape
    assert jnp.allclose(out, ref, atol=1e-4, rtol=1e-4)

    print("KERNEL_OK")
</pallas_src>

<mosaic_0001>
module attributes {stable_mosaic.version = 11 : i64} {
  func.func @_mm_cat_kernel(%arg0: i32, %arg1: i32, %arg2: memref<128x256xf32, #tpu.memory_space<vmem>>, %arg3: memref<256x128xf32, #tpu.memory_space<vmem>>, %arg4: memref<128x640xf32, #tpu.memory_space<vmem>>, %arg5: memref<128x128xf32, #tpu.memory_space<vmem>>) attributes {dimension_semantics = [#tpu.dimension_semantics<parallel>, #tpu.dimension_semantics<arbitrary>], iteration_bounds = array<i64: 2, 2>, scalar_prefetch = 0 : i64, scratch_operands = 1 : i64, tpu.core_type = #tpu.core_type<tc>, window_params = [{transform_indices = @transform_0, window_bounds = array<i64: 128, 256>}, {transform_indices = @transform_1, window_bounds = array<i64: 256, 128>}, {transform_indices = @transform_2, window_bounds = array<i64: 128, 640>}]} {
    %c0_i32 = arith.constant 0 : i32
    %0 = arith.cmpi eq, %arg1, %c0_i32 : i32
    %1 = arith.extui %0 : i1 to i32
    %c0_i32_0 = arith.constant 0 : i32
    %2 = arith.cmpi ne, %1, %c0_i32_0 : i32
    scf.if %2 {
      %cst_9 = arith.constant 0.000000e+00 : f32
      %12 = vector.broadcast %cst_9 : f32 to vector<128x128xf32>
      %c0_10 = arith.constant 0 : index
      %c0_11 = arith.constant 0 : index
      %13 = vector.load %arg5[%c0_10, %c0_11] : memref<128x128xf32, #tpu.memory_space<vmem>>, vector<128x128xf32>
      tpu.vector_store %arg5[%c0_10, %c0_11], %12 {strides = array<i32>} : memref<128x128xf32, #tpu.memory_space<vmem>>, vector<128x128xf32>,
    } else {
    }
    %c0 = arith.constant 0 : index
    %c0_1 = arith.constant 0 : index
    %3 = vector.load %arg5[%c0, %c0_1] : memref<128x128xf32, #tpu.memory_space<vmem>>, vector<128x128xf32>
    %c0_2 = arith.constant 0 : index
    %c0_3 = arith.constant 0 : index
    %4 = vector.load %arg2[%c0_2, %c0_3] : memref<128x256xf32, #tpu.memory_space<vmem>>, vector<128x256xf32>
    %c0_4 = arith.constant 0 : index
    %c0_5 = arith.constant 0 : index
    %5 = vector.load %arg3[%c0_4, %c0_5] : memref<256x128xf32, #tpu.memory_space<vmem>>, vector<256x128xf32>
    %cst = arith.constant dense<0.000000e+00> : vector<128x128xf32>
    %6 = tpu.matmul %4, %5, %cst {dimension_numbers = #tpu.dot_dimension_numbers<[1], [0], [0], [1], [0, 0, 1, 1], [], []>} : vector<128x256xf32>, vector<256x128xf32>, vector<128x128xf32> -> vector<128x128xf32>
    %7 = arith.addf %3, %6 : vector<128x128xf32>
    %c0_6 = arith.constant 0 : index
    %c0_7 = arith.constant 0 : index
    %8 = vector.load %arg5[%c0_6, %c0_7] : memref<128x128xf32, #tpu.memory_space<vmem>>, vector<128x128xf32>
    tpu.vector_store %arg5[%c0_6, %c0_7], %7 {strides = array<i32>} : memref<128x128xf32, #tpu.memory_space<vmem>>, vector<128x128xf32>,
    %c1_i32 = arith.constant 1 : i32
    %9 = arith.cmpi eq, %arg1, %c1_i32 : i32
    %10 = arith.extui %9 : i1 to i32
    %c0_i32_8 = arith.constant 0 : i32
    %11 = arith.cmpi ne, %10, %c0_i32_8 : i32
    scf.if %11 {
      %c0_9 = arith.constant 0 : index
      %c0_10 = arith.constant 0 : index
      %12 = vector.load %arg5[%c0_9, %c0_10] : memref<128x128xf32, #tpu.memory_space<vmem>>, vector<128x128xf32>
      %c0_11 = arith.constant 0 : index
      %c0_12 = arith.constant 0 : index
      %13 = vector.load %arg4[%c0_11, %c0_12] : memref<128x640xf32, #tpu.memory_space<vmem>>, vector<128x128xf32>
      tpu.vector_store %arg4[%c0_11, %c0_12], %12 {strides = array<i32>} : memref<128x640xf32, #tpu.memory_space<vmem>>, vector<128x128xf32>,
      %c0_13 = arith.constant 0 : index
      %c128 = arith.constant 128 : index
      %14 = vector.load %arg4[%c0_13, %c128] : memref<128x640xf32, #tpu.memory_space<vmem>>, vector<128x128xf32>
      tpu.vector_store %arg4[%c0_13, %c128], %12 {strides = array<i32>} : memref<128x640xf32, #tpu.memory_space<vmem>>, vector<128x128xf32>,
      %c0_14 = arith.constant 0 : index
      %c256 = arith.constant 256 : index
      %15 = vector.load %arg4[%c0_14, %c256] : memref<128x640xf32, #tpu.memory_space<vmem>>, vector<128x128xf32>
      tpu.vector_store %arg4[%c0_14, %c256], %12 {strides = array<i32>} : memref<128x640xf32, #tpu.memory_space<vmem>>, vector<128x128xf32>,
      %c0_15 = arith.constant 0 : index
      %c384 = arith.constant 384 : index
      %16 = vector.load %arg4[%c0_15, %c384] : memref<128x640xf32, #tpu.memory_space<vmem>>, vector<128x128xf32>
      tpu.vector_store %arg4[%c0_15, %c384], %12 {strides = array<i32>} : memref<128x640xf32, #tpu.memory_space<vmem>>, vector<128x128xf32>,
      %c0_16 = arith.constant 0 : index
      %c512 = arith.constant 512 : index
      %17 = vector.load %arg4[%c0_16, %c512] : memref<128x640xf32, #tpu.memory_space<vmem>>, vector<128x128xf32>
      tpu.vector_store %arg4[%c0_16, %c512], %12 {strides = array<i32>} : memref<128x640xf32, #tpu.memory_space<vmem>>, vector<128x128xf32>,
    } else {
    }
    return
  }
  func.func @transform_0(%arg0: i32, %arg1: i32) -> (i32, i32) {
    %c0_i32 = arith.constant 0 : i32
    return %arg0, %arg1 : i32, i32
  }
  func.func @transform_1(%arg0: i32, %arg1: i32) -> (i32, i32) {
    %c0_i32 = arith.constant 0 : i32
    %c0_i32_0 = arith.constant 0 : i32
    return %arg1, %c0_i32 : i32, i32
  }
  func.func @transform_2(%arg0: i32, %arg1: i32) -> (i32, i32) {
    %c0_i32 = arith.constant 0 : i32
    %c0_i32_0 = arith.constant 0 : i32
    return %arg0, %c0_i32 : i32, i32
  }
}

</mosaic_0001>

<llo_original>
// kernel: tpu_custom_call.1
$region0: #{tpu_custom_call.1}
  #allocation0 [shape = 'u32[]', space=smem, size = 0x4, offset = 0x4, fixed_abs, tag = 'smem constant byte address 0x4 - core index']
  #allocation1 [shape = 'u32[144,128]{1,0:T(1,128)}', space=vmem, size = 0x12000, scoped, tag = 'internal scratch']
  #allocation2 [shape = 'f32[128,128]{1,0:T(8,128)}', space=vmem, size = 0x10000, scoped, tag = 'scratch operand']
  %s0 = inlined_call_operand.hbm [shape: f32[256,512], index: 0, kind: input, shape index: {}]
  %s1 = inlined_call_operand.hbm [shape: f32[512,128], index: 1, kind: input, shape index: {}]
  %s2 = inlined_call_operand.hbm [shape: f32[256,640], index: 2, kind: output, shape index: {}]
  %s3 = sld [smem:[#allocation0]]
  $region57: #{tpu_custom_call.1} parent=0
    _
  %s5 = ssub.s32 1, %s3
  %s6 = scalar_select 0, %s5, %s3
  $region1: #{tpu_custom_call.1} parent=0
    #allocation3 [shape = 'u8[262144]{0}', space=vmem, size = 0x40000, scoped, tag = 'input window, operand 0']
    #allocation4 [shape = 's32[2]{0}', space=sflag, size = 0x8, scoped, tag = 'scoped memory for tpu_custom_call.1']
    #allocation5 [shape = 's32[2]{0}', space=sflag, size = 0x8, scoped, tag = 'scoped memory for tpu_custom_call.1']
    #allocation6 [shape = 'u8[262144]{0}', space=vmem, size = 0x40000, scoped, tag = 'input window, operand 1']
    #allocation7 [shape = 's32[2]{0}', space=sflag, size = 0x8, scoped, tag = 'scoped memory for tpu_custom_call.1']
    #allocation8 [shape = 'u8[655360]{0}', space=vmem, size = 0xa0000, scoped, tag = 'output window, operand 0']
    %7 = vsyncpa [#allocation4], 0
    %s8 = scalar_lea.sflag [#allocation4], 1
    %9 = vsyncpa %s8, 0
    %10 = vsyncpa [#allocation7], 0
    %s11 = scalar_lea.sflag [#allocation7], 1
    %12 = vsyncpa %s11, 0
    %13 = vsyncpa [#allocation5], 0
    %s14 = scalar_lea.sflag [#allocation5], 1
    %15 = vsyncpa %s14, 0
    loop: start=0, step=1, limit=6
    $region2: #{tpu_custom_call.1} parent=1 // loop_pre_header
      _
    $region3: #{tpu_custom_call.1} parent=1 // loop_header
      %s17 = sphi 0, %s21
      %p18 = scmp.ge.s32.totalorder %s17, 6
      %s24 = sphi 0, %s36
      %s25 = sphi 0, %s32
      %s26 = sphi 0, %s24
      %s27 = sphi 0, %s25
      %s28 = sphi 0, %s26
      %s29 = sphi 0, %s27
      %s41 = sphi 0, %s43
      %s44 = sphi 0, %s41
      %s45 = sphi 0, %s44
      %s61 = sphi 0, %s45
      %s67 = sphi 0, %s69
      %s70 = sphi 0, %s67
      %s71 = sphi 0, %s70
      %s87 = sphi 0, %s71
      %s93 = sphi 0, %s95
      %s96 = sphi 0, %s93
      %s97 = sphi 0, %s96
      %s113 = sphi 0, %s97
    $region4: #{tpu_custom_call.1} parent=1 // loop_header_branch
      %20 = sbr.rel (%p18) target = $region8
    $region5: #{tpu_custom_call.1} parent=1 // loop_body
      %s22 = ssub.s32 %s17, 1
      %s23 = ssub.s32 %s17, 2
      %s30 = sadd.s32 1, %s25
      %p31 = scmp.ge.s32.totalorder %s30, 2
      %s32 = scalar_select %p31, 0, %s30
      %s33 = sadd.s32 1, %s24
      %s34 = scalar_select %p31, %s33, %s24
      %p35 = scmp.ge.s32.totalorder %s34, 2
      %s36 = scalar_select %p35, 0, %s34
      %s37 = ssub.s32 %s24, %s36
      %s38 = ssub.s32 %s25, %s32
      %s39 = sor.u32 %s37, %s38
      %p40 = scmp.eq.s32.totalorder %s39, 0
      %s42 = sadd.s32 %s41, 1
      %s43 = scalar_select %p40, %s41, %s42
      %p46 = pneg %p40
      %p47 = scmp.eq.s32.totalorder %s17, 3
      %p48 = por %p46, %p47
      %p49 = scmp.ne.s32.totalorder %s41, %s44
      %p50 = scmp.eq.s32.totalorder %s17, 0
      %p51 = por %p49, %p50
      %p52 = scmp.ne.s32.totalorder %s41, %s44
      %p53 = scmp.eq.s32.totalorder %s22, 3
      %p54 = por %p52, %p53
      %p55 = scmp.ne.s32.totalorder %s44, %s45
      %p56 = scmp.eq.s32.totalorder %s22, 0
      %p57 = por %p55, %p56
      %p58 = scmp.ne.s32.totalorder %s44, %s45
      %p59 = scmp.eq.s32.totalorder %s23, 3
      %p60 = por %p58, %p59
      %p62 = scmp.ne.s32.totalorder %s45, %s61
      %p63 = scmp.eq.s32.totalorder %s23, 0
      %p64 = por %p62, %p63
      %s65 = ssub.s32 %s25, %s32
      %p66 = scmp.eq.s32.totalorder %s65, 0
      %s68 = sadd.s32 %s67, 1
      %s69 = scalar_select %p66, %s67, %s68
      %p72 = pneg %p66
      %p73 = scmp.eq.s32.totalorder %s17, 3
      %p74 = por %p72, %p73
      %p75 = scmp.ne.s32.totalorder %s67, %s70
      %p76 = scmp.eq.s32.totalorder %s17, 0
      %p77 = por %p75, %p76
      %p78 = scmp.ne.s32.totalorder %s67, %s70
      %p79 = scmp.eq.s32.totalorder %s22, 3
      %p80 = por %p78, %p79
      %p81 = scmp.ne.s32.totalorder %s70, %s71
      %p82 = scmp.eq.s32.totalorder %s22, 0
      %p83 = por %p81, %p82
      %p84 = scmp.ne.s32.totalorder %s70, %s71
      %p85 = scmp.eq.s32.totalorder %s23, 3
      %p86 = por %p84, %p85
      %p88 = scmp.ne.s32.totalorder %s71, %s87
      %p89 = scmp.eq.s32.totalorder %s23, 0
      %p90 = por %p88, %p89
      %s91 = ssub.s32 %s24, %s36
      %p92 = scmp.eq.s32.totalorder %s91, 0
      %s94 = sadd.s32 %s93, 1
      %s95 = scalar_select %p92, %s93, %s94
      %p98 = pneg %p92
      %p99 = scmp.eq.s32.totalorder %s17, 3
      %p100 = por %p98, %p99
      %p101 = scmp.ne.s32.totalorder %s93, %s96
      %p102 = scmp.eq.s32.totalorder %s17, 0
      %p103 = por %p101, %p102
      %p104 = scmp.ne.s32.totalorder %s93, %s96
      %p105 = scmp.eq.s32.totalorder %s22, 3
      %p106 = por %p104, %p105
      %p107 = scmp.ne.s32.totalorder %s96, %s97
      %p108 = scmp.eq.s32.totalorder %s22, 0
      %p109 = por %p107, %p108
      %p110 = scmp.ne.s32.totalorder %s96, %s97
      %p111 = scmp.eq.s32.totalorder %s23, 3
      %p112 = por %p110, %p111
      %p114 = scmp.ne.s32.totalorder %s97, %s113
      %p115 = scmp.eq.s32.totalorder %s23, 0
      %p116 = por %p114, %p115
      %p117 = scmp.le.s32.totalorder 1, %s17
      %p118 = scmp.lt.s32.totalorder %s17, 5
      %p119 = pnand %p117, %p118
      %p120 = pneg %p119
      // Predicated region
      $region9: #{tpu_custom_call.1} parent=5 // pred_check
        _
      $region10: #{tpu_custom_call.1} parent=5 // pred_check_branch
        %122 = sbr.rel (%p119) target = $region12
      $region11: #{tpu_custom_call.1} parent=5 // pred_region
        %s123 = ssub.s32 %s17, 1
      $region12: #{tpu_custom_call.1} parent=5 // pred_fallthru
        _
      %p124 = scmp.lt.s32.totalorder %s17, 4
      // Predicated region
      $region13: #{tpu_custom_call.1} parent=5 // pred_check
        %p125 = pneg %p124
      $region14: #{tpu_custom_call.1} parent=5 // pred_check_branch
        %127 = sbr.rel (%p125) target = $region16
      $region15: #{tpu_custom_call.1} parent=5 // pred_region
        // Predicated region
        $region17: #{tpu_custom_call.1} parent=15 // pred_check
          %p128 = pneg %p51
        $region18: #{tpu_custom_call.1} parent=15 // pred_check_branch
          %130 = sbr.rel (%p128) target = $region20
        $region19: #{tpu_custom_call.1} parent=15 // pred_region
          %s131 = sand.u32 %s41, 1
          %s132 = scalar_lea.sflag [#allocation4], %s131
          %s133 = sand.u32 %s41, 1
          %s134 = smul.addr %s133, 256
          %s135 = scalar_lea.vmem [#allocation3], %s134
          %s136 = smul.u32 16, %s24
          %s137 = smul.u32 2, %s25
          %s139 = ssub.s32 4096, 4096
          %140 = vsyncadd %s132, %s139
          %s141 = smul.addr %s136, 4
          %s142 = sadd.s32 %s137, %s141
          %s143 = smul.addr %s142, 128
          %s144 = scalar_lea.hbm %s0, %s143
          %s145 = sshll.u32 %s135, 4
          %s146 = int_to_ptr.vmem [resolvable:$true] %s145
          %151 = dma.hbm_to_vmem [thread:$0]  %s144, 4096, %s146, %s132, 512, 256, 16
        $region20: #{tpu_custom_call.1} parent=15 // pred_fallthru
          _
        // Predicated region
        $region21: #{tpu_custom_call.1} parent=15 // pred_check
          %p152 = pneg %p77
        $region22: #{tpu_custom_call.1} parent=15 // pred_check_branch
          %154 = sbr.rel (%p152) target = $region24
        $region23: #{tpu_custom_call.1} parent=15 // pred_region
          %s155 = sand.u32 %s67, 1
          %s156 = scalar_lea.sflag [#allocation7], %s155
          %s157 = sand.u32 %s67, 1
          %s158 = smul.addr %s157, 256
          %s159 = scalar_lea.vmem [#allocation6], %s158
          %s160 = smul.u32 32, %s25
          %s162 = ssub.s32 4096, 4096
          %163 = vsyncadd %s156, %s162
          %s164 = smul.addr %s160, 128
          %s165 = scalar_lea.hbm %s1, %s164
          %s166 = sshll.u32 %s159, 4
          %s167 = int_to_ptr.vmem [resolvable:$true] %s166
          %172 = dma.hbm_to_vmem [thread:$0]  %s165, 4096, %s167, %s156, 128, 128, 8
        $region24: #{tpu_custom_call.1} parent=15 // pred_fallthru
          _
      $region16: #{tpu_custom_call.1} parent=5 // pred_fallthru
        _
      %p173 = scmp.le.s32.totalorder 1, %s17
      %p174 = scmp.lt.s32.totalorder %s17, 5
      %p175 = pnand %p173, %p174
      %p176 = pneg %p175
      // Predicated region
      $region25: #{tpu_custom_call.1} parent=5 // pred_check
        _
      $region26: #{tpu_custom_call.1} parent=5 // pred_check_branch
        %178 = sbr.rel (%p175) target = $region28
      $region27: #{tpu_custom_call.1} parent=5 // pred_region
        %s179 = ssub.s32 %s17, 1
        %s180 = sand.u32 %s44, 1
        %s181 = scalar_lea.sflag [#allocation4], %s180
        %s182 = sand.u32 %s44, 1
        %s183 = smul.addr %s182, 256
        %s184 = scalar_lea.vmem [#allocation3], %s183
        // Predicated region
        $region29: #{tpu_custom_call.1} parent=27 // pred_check
          %p185 = pneg %p57
        $region30: #{tpu_custom_call.1} parent=27 // pred_check_branch
          %187 = sbr.rel (%p185) target = $region32
        $region31: #{tpu_custom_call.1} parent=27 // pred_region
          %188 = dma.done %s181, 4096
        $region32: #{tpu_custom_call.1} parent=27 // pred_fallthru
          _
        %s189 = sand.u32 %s70, 1
        %s190 = scalar_lea.sflag [#allocation7], %s189
        %s191 = sand.u32 %s70, 1
        %s192 = smul.addr %s191, 256
        %s193 = scalar_lea.vmem [#allocation6], %s192
        // Predicated region
        $region33: #{tpu_custom_call.1} parent=27 // pred_check
          %p194 = pneg %p83
        $region34: #{tpu_custom_call.1} parent=27 // pred_check_branch
          %196 = sbr.rel (%p194) target = $region36
        $region35: #{tpu_custom_call.1} parent=27 // pred_region
          %197 = dma.done %s190, 4096
        $region36: #{tpu_custom_call.1} parent=27 // pred_fallthru
          _
        %s198 = sand.u32 %s44, 1
        %s199 = scalar_lea.sflag [#allocation4], %s198
        %s200 = sand.u32 %s44, 1
        %s201 = smul.addr %s200, 256
        %s202 = scalar_lea.vmem [#allocation3], %s201
        %p203 = pneg %p57
        %p204 = pneg %p54
        %s205 = sand.u32 %s70, 1
        %s206 = scalar_lea.sflag [#allocation7], %s205
        %s207 = sand.u32 %s70, 1
        %s208 = smul.addr %s207, 256
        %s209 = scalar_lea.vmem [#allocation6], %s208
        %p210 = pneg %p83
        %p211 = pneg %p80
        %p212 = pneg %p109
        %p213 = pneg %p106
        %s214 = sand.u32 %s96, 1
        %s215 = scalar_lea.sflag [#allocation5], %s214
        %s216 = sand.u32 %s96, 1
        %s217 = smul.addr %s216, 640
        %s218 = scalar_lea.vmem [#allocation8], %s217
        %s219 = smul.u32 16, %s26
        %s220 = smul.u32 2, %s27
        %s221 = smul.u32 32, %s27
        %s222 = smul.u32 16, %s26
        %p223 = scmp.eq.s32.totalorder %s27, 0
        // Predicated region
        $region37: #{tpu_custom_call.1} parent=27 // pred_check
          %p224 = pneg %p223
        $region38: #{tpu_custom_call.1} parent=27 // pred_check_branch
          %226 = sbr.rel (%p224) target = $region40
        $region39: #{tpu_custom_call.1} parent=27 // pred_region
          %227 = vst [vmem:[#allocation2] sm:$0xff] 0.0
          %228 = vst [vmem:[#allocation2 + $0x8] sm:$0xff] 0.0
          %229 = vst [vmem:[#allocation2 + $0x10] sm:$0xff] 0.0
          %230 = vst [vmem:[#allocation2 + $0x18] sm:$0xff] 0.0
          %231 = vst [vmem:[#allocation2 + $0x20] sm:$0xff] 0.0
          %232 = vst [vmem:[#allocation2 + $0x28] sm:$0xff] 0.0
          %233 = vst [vmem:[#allocation2 + $0x30] sm:$0xff] 0.0
          %234 = vst [vmem:[#allocation2 + $0x38] sm:$0xff] 0.0
          %235 = vst [vmem:[#allocation2 + $0x40] sm:$0xff] 0.0
          %236 = vst [vmem:[#allocation2 + $0x48] sm:$0xff] 0.0
          %237 = vst [vmem:[#allocation2 + $0x50] sm:$0xff] 0.0
          %238 = vst [vmem:[#allocation2 + $0x58] sm:$0xff] 0.0
          %239 = vst [vmem:[#allocation2 + $0x60] sm:$0xff] 0.0
          %240 = vst [vmem:[#allocation2 + $0x68] sm:$0xff] 0.0
          %241 = vst [vmem:[#allocation2 + $0x70] sm:$0xff] 0.0
          %242 = vst [vmem:[#allocation2 + $0x78] sm:$0xff] 0.0
        $region40: #{tpu_custom_call.1} parent=27 // pred_fallthru
          _
        %v243 = vld [vmem:[#allocation2] sm:$0xff]
        %v244 = vld [vmem:[#allocation2 + $0x8] sm:$0xff]
        %v245 = vld [vmem:[#allocation2 + $0x10] sm:$0xff]
        %v246 = vld [vmem:[#allocation2 + $0x18] sm:$0xff]
        %v247 = vld [vmem:[#allocation2 + $0x20] sm:$0xff]
        %v248 = vld [vmem:[#allocation2 + $0x28] sm:$0xff]
        %v249 = vld [vmem:[#allocation2 + $0x30] sm:$0xff]
        %v250 = vld [vmem:[#allocation2 + $0x38] sm:$0xff]
        %v251 = vld [vmem:[#allocation2 + $0x40] sm:$0xff]
        %v252 = vld [vmem:[#allocation2 + $0x48] sm:$0xff]
        %v253 = vld [vmem:[#allocation2 + $0x50] sm:$0xff]
        %v254 = vld [vmem:[#allocation2 + $0x58] sm:$0xff]
        %v255 = vld [vmem:[#allocation2 + $0x60] sm:$0xff]
        %v256 = vld [vmem:[#allocation2 + $0x68] sm:$0xff]
        %v257 = vld [vmem:[#allocation2 + $0x70] sm:$0xff]
        %v258 = vld [vmem:[#allocation2 + $0x78] sm:$0xff]
        %v259 = vld [vmem:[%s184] sm:$0xff]
        %v260 = vld [vmem:[%s184 + $0x8] sm:$0xff]
        %v261 = vld [vmem:[%s184 + $0x10] sm:$0xff]
        %v262 = vld [vmem:[%s184 + $0x18] sm:$0xff]
        %v263 = vld [vmem:[%s184 + $0x20] sm:$0xff]
        %v264 = vld [vmem:[%s184 + $0x28] sm:$0xff]
        %v265 = vld [vmem:[%s184 + $0x30] sm:$0xff]
        %v266 = vld [vmem:[%s184 + $0x38] sm:$0xff]
        %v267 = vld [vmem:[%s184 + $0x40] sm:$0xff]
        %v268 = vld [vmem:[%s184 + $0x48] sm:$0xff]
        %v269 = vld [vmem:[%s184 + $0x50] sm:$0xff]
        %v270 = vld [vmem:[%s184 + $0x58] sm:$0xff]
        %v271 = vld [vmem:[%s184 + $0x60] sm:$0xff]
        %v272 = vld [vmem:[%s184 + $0x68] sm:$0xff]
        %v273 = vld [vmem:[%s184 + $0x70] sm:$0xff]
        %v274 = vld [vmem:[%s184 + $0x78] sm:$0xff]
        %v275 = vld [vmem:[%s184 + $0x80] sm:$0xff]
        %v276 = vld [vmem:[%s184 + $0x88] sm:$0xff]
        %v277 = vld [vmem:[%s184 + $0x90] sm:$0xff]
        %v278 = vld [vmem:[%s184 + $0x98] sm:$0xff]
        %v279 = vld [vmem:[%s184 + $0xa0] sm:$0xff]
        %v280 = vld [vmem:[%s184 + $0xa8] sm:$0xff]
        %v281 = vld [vmem:[%s184 + $0xb0] sm:$0xff]
        %v282 = vld [vmem:[%s184 + $0xb8] sm:$0xff]
        %v283 = vld [vmem:[%s184 + $0xc0] sm:$0xff]
        %v284 = vld [vmem:[%s184 + $0xc8] sm:$0xff]
        %v285 = vld [vmem:[%s184 + $0xd0] sm:$0xff]
        %v286 = vld [vmem:[%s184 + $0xd8] sm:$0xff]
        %v287 = vld [vmem:[%s184 + $0xe0] sm:$0xff]
        %v288 = vld [vmem:[%s184 + $0xe8] sm:$0xff]
        %v289 = vld [vmem:[%s184 + $0xf0] sm:$0xff]
        %v290 = vld [vmem:[%s184 + $0xf8] sm:$0xff]
        %v291 = vld [vmem:[%s193] sm:$0xff]
        %v292 = vld [vmem:[%s193 + $0x8] sm:$0xff]
        %v293 = vld [vmem:[%s193 + $0x10] sm:$0xff]
        %v294 = vld [vmem:[%s193 + $0x18] sm:$0xff]
        %v295 = vld [vmem:[%s193 + $0x20] sm:$0xff]
        %v296 = vld [vmem:[%s193 + $0x28] sm:$0xff]
        %v297 = vld [vmem:[%s193 + $0x30] sm:$0xff]
        %v298 = vld [vmem:[%s193 + $0x38] sm:$0xff]
        %v299 = vld [vmem:[%s193 + $0x40] sm:$0xff]
        %v300 = vld [vmem:[%s193 + $0x48] sm:$0xff]
        %v301 = vld [vmem:[%s193 + $0x50] sm:$0xff]
        %v302 = vld [vmem:[%s193 + $0x58] sm:$0xff]
        %v303 = vld [vmem:[%s193 + $0x60] sm:$0xff]
        %v304 = vld [vmem:[%s193 + $0x68] sm:$0xff]
        %v305 = vld [vmem:[%s193 + $0x70] sm:$0xff]
        %v306 = vld [vmem:[%s193 + $0x78] sm:$0xff]
        %v307 = vld [vmem:[%s193 + $0x80] sm:$0xff]
        %v308 = vld [vmem:[%s193 + $0x88] sm:$0xff]
        %v309 = vld [vmem:[%s193 + $0x90] sm:$0xff]
        %v310 = vld [vmem:[%s193 + $0x98] sm:$0xff]
        %v311 = vld [vmem:[%s193 + $0xa0] sm:$0xff]
        %v312 = vld [vmem:[%s193 + $0xa8] sm:$0xff]
        %v313 = vld [vmem:[%s193 + $0xb0] sm:$0xff]
        %v314 = vld [vmem:[%s193 + $0xb8] sm:$0xff]
        %v315 = vld [vmem:[%s193 + $0xc0] sm:$0xff]
        %v316 = vld [vmem:[%s193 + $0xc8] sm:$0xff]
        %v317 = vld [vmem:[%s193 + $0xd0] sm:$0xff]
        %v318 = vld [vmem:[%s193 + $0xd8] sm:$0xff]
        %v319 = vld [vmem:[%s193 + $0xe0] sm:$0xff]
        %v320 = vld [vmem:[%s193 + $0xe8] sm:$0xff]
        %v321 = vld [vmem:[%s193 + $0xf0] sm:$0xff]
        %v322 = vld [vmem:[%s193 + $0xf8] sm:$0xff]
        %323 = vmatprep.subr.mxu0 0.0
        %324 = vmatpush1.msra.mxu0 %v291
        %325 = vmatprep.subr.mxu0 0.0
        %326 = vmatpush1.msra.mxu0 %v292
        %327 = vmatprep.subr.mxu0 0.0
        %328 = vmatpush1.msra.mxu0 %v293
        %329 = vmatprep.subr.mxu0 0.0
        %330 = vmatpush1.msra.mxu0 %v294
        %331 = vmatprep.subr.mxu0 0.0
        %332 = vmatpush1.msra.mxu0 %v295
        %333 = vmatprep.subr.mxu0 0.0
        %334 = vmatpush1.msra.mxu0 %v296
        %335 = vmatprep.subr.mxu0 0.0
        %336 = vmatpush1.msra.mxu0 %v297
        %337 = vmatprep.subr.mxu0 0.0
        %338 = vmatpush1.msra.mxu0 %v298
        %339 = vmatprep.subr.mxu0 0.0
        %340 = vmatpush1.msra.mxu0 %v299
        %341 = vmatprep.subr.mxu0 0.0
        %342 = vmatpush1.msra.mxu0 %v300
        %343 = vmatprep.subr.mxu0 0.0
        %344 = vmatpush1.msra.mxu0 %v301
        %345 = vmatprep.subr.mxu0 0.0
        %346 = vmatpush1.msra.mxu0 %v302
        %347 = vmatprep.subr.mxu0 0.0
        %348 = vmatpush1.msra.mxu0 %v303
        %349 = vmatprep.subr.mxu0 0.0
        %350 = vmatpush1.msra.mxu0 %v304
        %351 = vmatprep.subr.mxu0 0.0
        %352 = vmatpush1.msra.mxu0 %v305
        %353 = vmatprep.subr.mxu0 0.0
        %354 = vmatpush1.msra.mxu0 %v306
        %355 = vmatprep.subr.mxu0 0.0
        %356 = vmatpush1.msra.mxu0 %v307
        %357 = vmatprep.subr.mxu0 0.0
        %358 = vmatpush1.msra.mxu0 %v308
        %359 = vmatprep.subr.mxu0 0.0
        %360 = vmatpush1.msra.mxu0 %v309
        %361 = vmatprep.subr.mxu0 0.0
        %362 = vmatpush1.msra.mxu0 %v310
        %363 = vmatprep.subr.mxu0 0.0
        %364 = vmatpush1.msra.mxu0 %v311
        %365 = vmatprep.subr.mxu0 0.0
        %366 = vmatpush1.msra.mxu0 %v312
        %367 = vmatprep.subr.mxu0 0.0
        %368 = vmatpush1.msra.mxu0 %v313
        %369 = vmatprep.subr.mxu0 0.0
        %370 = vmatpush1.msra.mxu0 %v314
        %371 = vmatprep.subr.mxu0 0.0
        %372 = vmatpush1.msra.mxu0 %v315
        %373 = vmatprep.subr.mxu0 0.0
        %374 = vmatpush1.msra.mxu0 %v316
        %375 = vmatprep.subr.mxu0 0.0
        %376 = vmatpush1.msra.mxu0 %v317
        %377 = vmatprep.subr.mxu0 0.0
        %378 = vmatpush1.msra.mxu0 %v318
        %379 = vmatprep.subr.mxu0 0.0
        %380 = vmatpush1.msra.mxu0 %v319
        %381 = vmatprep.subr.mxu0 0.0
        %382 = vmatpush1.msra.mxu0 %v320
        %383 = vmatprep.subr.mxu0 0.0
        %384 = vmatpush1.msra.mxu0 %v321
        %385 = vmatprep.subr.mxu0 0.0
        %386 = vmatpush1.msra.mxu0 %v322
        %387 = vmatprep.mubr.f32.mxu0 %v260
        %388 = vmatmul.mubr.f32.gmra.mrb[0].mxu0 %v259
        %v389 = vpop.f32.mrb[0].mxu0
        %v390 = vadd.f32 0.0, %v389
        %v391 = vpop.f32.mrb[0].mxu0
        %392 = vmatprep.mubr.f32.mxu0 %v262
        %393 = vmatmul.mubr.f32.gmra.mrb[0].mxu0 %v261
        %v394 = vpop.f32.mrb[0].mxu0
        %v395 = vadd.f32 0.0, %v394
        %v396 = vpop.f32.mrb[0].mxu0
        %397 = vmatprep.mubr.f32.mxu0 %v264
        %398 = vmatmul.mubr.f32.gmra.mrb[0].mxu0 %v263
        %v399 = vpop.f32.mrb[0].mxu0
        %v400 = vadd.f32 0.0, %v399
        %v401 = vpop.f32.mrb[0].mxu0
        %402 = vmatprep.mubr.f32.mxu0 %v266
        %403 = vmatmul.mubr.f32.gmra.mrb[0].mxu0 %v265
        %v404 = vpop.f32.mrb[0].mxu0
        %v405 = vadd.f32 0.0, %v404
        %v406 = vpop.f32.mrb[0].mxu0
        %407 = vmatprep.mubr.f32.mxu0 %v268
        %408 = vmatmul.mubr.f32.gmra.mrb[0].mxu0 %v267
        %v409 = vpop.f32.mrb[0].mxu0
        %v410 = vadd.f32 0.0, %v409
        %v411 = vpop.f32.mrb[0].mxu0
        %412 = vmatprep.mubr.f32.mxu0 %v270
        %413 = vmatmul.mubr.f32.gmra.mrb[0].mxu0 %v269
        %v414 = vpop.f32.mrb[0].mxu0
        %v415 = vadd.f32 0.0, %v414
        %v416 = vpop.f32.mrb[0].mxu0
        %417 = vmatprep.mubr.f32.mxu0 %v272
        %418 = vmatmul.mubr.f32.gmra.mrb[0].mxu0 %v271
        %v419 = vpop.f32.mrb[0].mxu0
        %v420 = vadd.f32 0.0, %v419
        %v421 = vpop.f32.mrb[0].mxu0
        %422 = vmatprep.mubr.f32.mxu0 %v274
        %423 = vmatmul.mubr.f32.gmra.mrb[0].mxu0 %v273
        %v424 = vpop.f32.mrb[0].mxu0
        %v425 = vadd.f32 0.0, %v424
        %v426 = vpop.f32.mrb[0].mxu0
        %427 = vmatprep.mubr.f32.mxu0 %v276
        %428 = vmatmul.mubr.f32.gmra.mrb[0].mxu0 %v275
        %v429 = vpop.f32.mrb[0].mxu0
        %v430 = vadd.f32 0.0, %v429
        %v431 = vpop.f32.mrb[0].mxu0
        %432 = vmatprep.mubr.f32.mxu0 %v278
        %433 = vmatmul.mubr.f32.gmra.mrb[0].mxu0 %v277
        %v434 = vpop.f32.mrb[0].mxu0
        %v435 = vadd.f32 0.0, %v434
        %v436 = vpop.f32.mrb[0].mxu0
        %437 = vmatprep.mubr.f32.mxu0 %v280
        %438 = vmatmul.mubr.f32.gmra.mrb[0].mxu0 %v279
        %v439 = vpop.f32.mrb[0].mxu0
        %v440 = vadd.f32 0.0, %v439
        %v441 = vpop.f32.mrb[0].mxu0
        %442 = vmatprep.mubr.f32.mxu0 %v282
        %443 = vmatmul.mubr.f32.gmra.mrb[0].mxu0 %v281
        %v444 = vpop.f32.mrb[0].mxu0
        %v445 = vadd.f32 0.0, %v444
        %v446 = vpop.f32.mrb[0].mxu0
        %447 = vmatprep.mubr.f32.mxu0 %v284
        %448 = vmatmul.mubr.f32.gmra.mrb[0].mxu0 %v283
        %v449 = vpop.f32.mrb[0].mxu0
        %v450 = vadd.f32 0.0, %v449
        %v451 = vpop.f32.mrb[0].mxu0
        %452 = vmatprep.mubr.f32.mxu0 %v286
        %453 = vmatmul.mubr.f32.gmra.mrb[0].mxu0 %v285
        %v454 = vpop.f32.mrb[0].mxu0
        %v455 = vadd.f32 0.0, %v454
        %v456 = vpop.f32.mrb[0].mxu0
        %457 = vmatprep.mubr.f32.mxu0 %v288
        %458 = vmatmul.mubr.f32.gmra.mrb[0].mxu0 %v287
        %v459 = vpop.f32.mrb[0].mxu0
        %v460 = vadd.f32 0.0, %v459
        %v461 = vpop.f32.mrb[0].mxu0
        %462 = vmatprep.mubr.f32.mxu0 %v290
        %463 = vmatmul.mubr.f32.gmra.mrb[0].mxu0 %v289
        %v464 = vpop.f32.mrb[0].mxu0
        %v465 = vadd.f32 0.0, %v464
        %v466 = vpop.f32.mrb[0].mxu0
        %467 = vdwg.mxu0
        %v468 = vadd.f32 %v243, %v390
        %v469 = vadd.f32 %v244, %v395
        %v470 = vadd.f32 %v245, %v400
        %v471 = vadd.f32 %v246, %v405
        %v472 = vadd.f32 %v247, %v410
        %v473 = vadd.f32 %v248, %v415
        %v474 = vadd.f32 %v249, %v420
        %v475 = vadd.f32 %v250, %v425
        %v476 = vadd.f32 %v251, %v430
        %v477 = vadd.f32 %v252, %v435
        %v478 = vadd.f32 %v253, %v440
        %v479 = vadd.f32 %v254, %v445
        %v480 = vadd.f32 %v255, %v450
        %v481 = vadd.f32 %v256, %v455
        %v482 = vadd.f32 %v257, %v460
        %v483 = vadd.f32 %v258, %v465
        %484 = vst [vmem:[#allocation2] sm:$0xff] %v468
        %485 = vst [vmem:[#allocation2 + $0x8] sm:$0xff] %v469
        %486 = vst [vmem:[#allocation2 + $0x10] sm:$0xff] %v470
        %487 = vst [vmem:[#allocation2 + $0x18] sm:$0xff] %v471
        %488 = vst [vmem:[#allocation2 + $0x20] sm:$0xff] %v472
        %489 = vst [vmem:[#allocation2 + $0x28] sm:$0xff] %v473
        %490 = vst [vmem:[#allocation2 + $0x30] sm:$0xff] %v474
        %491 = vst [vmem:[#allocation2 + $0x38] sm:$0xff] %v475
        %492 = vst [vmem:[#allocation2 + $0x40] sm:$0xff] %v476
        %493 = vst [vmem:[#allocation2 + $0x48] sm:$0xff] %v477
        %494 = vst [vmem:[#allocation2 + $0x50] sm:$0xff] %v478
        %495 = vst [vmem:[#allocation2 + $0x58] sm:$0xff] %v479
        %496 = vst [vmem:[#allocation2 + $0x60] sm:$0xff] %v480
        %497 = vst [vmem:[#allocation2 + $0x68] sm:$0xff] %v481
        %498 = vst [vmem:[#allocation2 + $0x70] sm:$0xff] %v482
        %499 = vst [vmem:[#allocation2 + $0x78] sm:$0xff] %v483
        %p500 = scmp.eq.s32.totalorder %s27, 1
        // Predicated region
        $region41: #{tpu_custom_call.1} parent=27 // pred_check
          %p501 = pneg %p500
        $region42: #{tpu_custom_call.1} parent=27 // pred_check_branch
          %503 = sbr.rel (%p501) target = $region44
        $region43: #{tpu_custom_call.1} parent=27 // pred_region
          %v504 = vld [vmem:[#allocation2] sm:$0xff]
          %v505 = vld [vmem:[#allocation2 + $0x8] sm:$0xff]
          %v506 = vld [vmem:[#allocation2 + $0x10] sm:$0xff]
          %v507 = vld [vmem:[#allocation2 + $0x18] sm:$0xff]
          %v508 = vld [vmem:[#allocation2 + $0x20] sm:$0xff]
          %v509 = vld [vmem:[#allocation2 + $0x28] sm:$0xff]
          %v510 = vld [vmem:[#allocation2 + $0x30] sm:$0xff]
          %v511 = vld [vmem:[#allocation2 + $0x38] sm:$0xff]
          %v512 = vld [vmem:[#allocation2 + $0x40] sm:$0xff]
          %v513 = vld [vmem:[#allocation2 + $0x48] sm:$0xff]
          %v514 = vld [vmem:[#allocation2 + $0x50] sm:$0xff]
          %v515 = vld [vmem:[#allocation2 + $0x58] sm:$0xff]
          %v516 = vld [vmem:[#allocation2 + $0x60] sm:$0xff]
          %v517 = vld [vmem:[#allocation2 + $0x68] sm:$0xff]
          %v518 = vld [vmem:[#allocation2 + $0x70] sm:$0xff]
          %v519 = vld [vmem:[#allocation2 + $0x78] sm:$0xff]
          %520 = vst [vmem:[%s218] sm:$0xff] %v504
          %521 = vst [vmem:[%s218 + $0x28] sm:$0xff] %v505
          %522 = vst [vmem:[%s218 + $0x50] sm:$0xff] %v506
          %523 = vst [vmem:[%s218 + $0x78] sm:$0xff] %v507
          %524 = vst [vmem:[%s218 + $0xa0] sm:$0xff] %v508
          %525 = vst [vmem:[%s218 + $0xc8] sm:$0xff] %v509
          %526 = vst [vmem:[%s218 + $0xf0] sm:$0xff] %v510
          %527 = vst [vmem:[%s218 + $0x118] sm:$0xff] %v511
          %528 = vst [vmem:[%s218 + $0x140] sm:$0xff] %v512
          %529 = vst [vmem:[%s218 + $0x168] sm:$0xff] %v513
          %530 = vst [vmem:[%s218 + $0x190] sm:$0xff] %v514
          %531 = vst [vmem:[%s218 + $0x1b8] sm:$0xff] %v515
          %532 = vst [vmem:[%s218 + $0x1e0] sm:$0xff] %v516
          %533 = vst [vmem:[%s218 + $0x208] sm:$0xff] %v517
          %534 = vst [vmem:[%s218 + $0x230] sm:$0xff] %v518
          %535 = vst [vmem:[%s218 + $0x258] sm:$0xff] %v519
          %536 = vst [vmem:[%s218 + $0x8] sm:$0xff] %v504
          %537 = vst [vmem:[%s218 + $0x30] sm:$0xff] %v505
          %538 = vst [vmem:[%s218 + $0x58] sm:$0xff] %v506
          %539 = vst [vmem:[%s218 + $0x80] sm:$0xff] %v507
          %540 = vst [vmem:[%s218 + $0xa8] sm:$0xff] %v508
          %541 = vst [vmem:[%s218 + $0xd0] sm:$0xff] %v509
          %542 = vst [vmem:[%s218 + $0xf8] sm:$0xff] %v510
          %543 = vst [vmem:[%s218 + $0x120] sm:$0xff] %v511
          %544 = vst [vmem:[%s218 + $0x148] sm:$0xff] %v512
          %545 = vst [vmem:[%s218 + $0x170] sm:$0xff] %v513
          %546 = vst [vmem:[%s218 + $0x198] sm:$0xff] %v514
          %547 = vst [vmem:[%s218 + $0x1c0] sm:$0xff] %v515
          %548 = vst [vmem:[%s218 + $0x1e8] sm:$0xff] %v516
          %549 = vst [vmem:[%s218 + $0x210] sm:$0xff] %v517
          %550 = vst [vmem:[%s218 + $0x238] sm:$0xff] %v518
          %551 = vst [vmem:[%s218 + $0x260] sm:$0xff] %v519
          %552 = vst [vmem:[%s218 + $0x10] sm:$0xff] %v504
          %553 = vst [vmem:[%s218 + $0x38] sm:$0xff] %v505
          %554 = vst [vmem:[%s218 + $0x60] sm:$0xff] %v506
          %555 = vst [vmem:[%s218 + $0x88] sm:$0xff] %v507
          %556 = vst [vmem:[%s218 + $0xb0] sm:$0xff] %v508
          %557 = vst [vmem:[%s218 + $0xd8] sm:$0xff] %v509
          %558 = vst [vmem:[%s218 + $0x100] sm:$0xff] %v510
          %559 = vst [vmem:[%s218 + $0x128] sm:$0xff] %v511
          %560 = vst [vmem:[%s218 + $0x150] sm:$0xff] %v512
          %561 = vst [vmem:[%s218 + $0x178] sm:$0xff] %v513
          %562 = vst [vmem:[%s218 + $0x1a0] sm:$0xff] %v514
          %563 = vst [vmem:[%s218 + $0x1c8] sm:$0xff] %v515
          %564 = vst [vmem:[%s218 + $0x1f0] sm:$0xff] %v516
          %565 = vst [vmem:[%s218 + $0x218] sm:$0xff] %v517
          %566 = vst [vmem:[%s218 + $0x240] sm:$0xff] %v518
          %567 = vst [vmem:[%s218 + $0x268] sm:$0xff] %v519
          %568 = vst [vmem:[%s218 + $0x18] sm:$0xff] %v504
          %569 = vst [vmem:[%s218 + $0x40] sm:$0xff] %v505
          %570 = vst [vmem:[%s218 + $0x68] sm:$0xff] %v506
          %571 = vst [vmem:[%s218 + $0x90] sm:$0xff] %v507
          %572 = vst [vmem:[%s218 + $0xb8] sm:$0xff] %v508
          %573 = vst [vmem:[%s218 + $0xe0] sm:$0xff] %v509
          %574 = vst [vmem:[%s218 + $0x108] sm:$0xff] %v510
          %575 = vst [vmem:[%s218 + $0x130] sm:$0xff] %v511
          %576 = vst [vmem:[%s218 + $0x158] sm:$0xff] %v512
          %577 = vst [vmem:[%s218 + $0x180] sm:$0xff] %v513
          %578 = vst [vmem:[%s218 + $0x1a8] sm:$0xff] %v514
          %579 = vst [vmem:[%s218 + $0x1d0] sm:$0xff] %v515
          %580 = vst [vmem:[%s218 + $0x1f8] sm:$0xff] %v516
          %581 = vst [vmem:[%s218 + $0x220] sm:$0xff] %v517
          %582 = vst [vmem:[%s218 + $0x248] sm:$0xff] %v518
          %583 = vst [vmem:[%s218 + $0x270] sm:$0xff] %v519
          %584 = vst [vmem:[%s218 + $0x20] sm:$0xff] %v504
          %585 = vst [vmem:[%s218 + $0x48] sm:$0xff] %v505
          %586 = vst [vmem:[%s218 + $0x70] sm:$0xff] %v506
          %587 = vst [vmem:[%s218 + $0x98] sm:$0xff] %v507
          %588 = vst [vmem:[%s218 + $0xc0] sm:$0xff] %v508
          %589 = vst [vmem:[%s218 + $0xe8] sm:$0xff] %v509
          %590 = vst [vmem:[%s218 + $0x110] sm:$0xff] %v510
          %591 = vst [vmem:[%s218 + $0x138] sm:$0xff] %v511
          %592 = vst [vmem:[%s218 + $0x160] sm:$0xff] %v512
          %593 = vst [vmem:[%s218 + $0x188] sm:$0xff] %v513
          %594 = vst [vmem:[%s218 + $0x1b0] sm:$0xff] %v514
          %595 = vst [vmem:[%s218 + $0x1d8] sm:$0xff] %v515
          %596 = vst [vmem:[%s218 + $0x200] sm:$0xff] %v516
          %597 = vst [vmem:[%s218 + $0x228] sm:$0xff] %v517
          %598 = vst [vmem:[%s218 + $0x250] sm:$0xff] %v518
          %599 = vst [vmem:[%s218 + $0x278] sm:$0xff] %v519
        $region44: #{tpu_custom_call.1} parent=27 // pred_fallthru
          _
        %s600 = sand.u32 %s96, 1
        %s601 = scalar_lea.sflag [#allocation5], %s600
        %s602 = sand.u32 %s96, 1
        %s603 = smul.addr %s602, 640
        %s604 = scalar_lea.vmem [#allocation8], %s603
        // Predicated region
        $region45: #{tpu_custom_call.1} parent=27 // pred_check
          %p605 = pneg %p106
        $region46: #{tpu_custom_call.1} parent=27 // pred_check_branch
          %607 = sbr.rel (%p605) target = $region48
        $region47: #{tpu_custom_call.1} parent=27 // pred_region
          %s608 = smul.u32 16, %s26
          %s610 = ssub.s32 10240, 10240
          %611 = vsyncadd %s601, %s610
          %s612 = smul.addr %s608, 5
          %s613 = smul.addr %s612, 128
          %s614 = scalar_lea.hbm %s2, %s613
          %s615 = sshll.u32 %s604, 4
          %s616 = int_to_ptr.vmem [resolvable:$true] %s615
          %621 = dma.vmem_to_hbm [thread:$0]  %s616, 10240, %s614, %s601, 640, 640, 40
        $region48: #{tpu_custom_call.1} parent=27 // pred_fallthru
          _
      $region28: #{tpu_custom_call.1} parent=5 // pred_fallthru
        _
      %p622 = scmp.le.s32.totalorder 2, %s17
      // Predicated region
      $region49: #{tpu_custom_call.1} parent=5 // pred_check
        %p623 = pneg %p622
      $region50: #{tpu_custom_call.1} parent=5 // pred_check_branch
        %625 = sbr.rel (%p623) target = $region52
      $region51: #{tpu_custom_call.1} parent=5 // pred_region
        %s626 = ssub.s32 %s17, 2
        // Predicated region
        $region53: #{tpu_custom_call.1} parent=51 // pred_check
          %p627 = pneg %p112
        $region54: #{tpu_custom_call.1} parent=51 // pred_check_branch
          %629 = sbr.rel (%p627) target = $region56
        $region55: #{tpu_custom_call.1} parent=51 // pred_region
          %s630 = sand.u32 %s97, 1
          %s631 = scalar_lea.sflag [#allocation5], %s630
          %s632 = sand.u32 %s97, 1
          %s633 = smul.addr %s632, 640
          %s634 = scalar_lea.vmem [#allocation8], %s633
          %635 = dma.done %s631, 10240
        $region56: #{tpu_custom_call.1} parent=51 // pred_fallthru
          _
      $region52: #{tpu_custom_call.1} parent=5 // pred_fallthru
        _
    $region6: #{tpu_custom_call.1} parent=1 // loop_footer
      %s21 = sadd.s32 1, %s17
    $region7: #{tpu_custom_call.1} parent=1 // loop_footer_branch
      %16 = sbr.rel target = $region3
    $region8: #{tpu_custom_call.1} parent=1 // loop_exit
      _
    %636 = vsyncpa [#allocation4], 1
    %s637 = scalar_lea.sflag [#allocation4], 1
    %638 = vsyncpa %s637, 1
    %639 = vsyncpa [#allocation7], 1
    %s640 = scalar_lea.sflag [#allocation7], 1
    %641 = vsyncpa %s640, 1
    %642 = vsyncpa [#allocation5], 1
    %s643 = scalar_lea.sflag [#allocation5], 1
    %644 = vsyncpa %s643, 1

</llo_original>
